<compile_context>
chip_gen: v6e
topology: v6e:2x2x1
jax: 0.10.0
libtpu: 0.0.40
codegen_flags: <defaults>
</compile_context>

<pallas_src>
import jax
import jax.numpy as jnp
from jax.experimental import pallas as pl
from jax.experimental.pallas import tpu as pltpu

DIM = 32          # feature dim (d)
EPS = 1e-8
LANES = 128       # TPU lane width


def _round_up(a, m):
    return -(-a // m) * m


def prenorm_kernel(x_ref, mask_ref, w_ref, b_ref, o_ref):
    # x_ref:    VMEM (TM, 128)     packed input rows (128//D tokens per row)
    # mask_ref: VMEM (128, 128)    block-diag ones mask, pre-scaled by 1/D
    # w_ref:    VMEM (128, 128)    block-diag Linear weight, (in, out) layout,
    #                              pre-scaled by the RMSNorm gain g
    # b_ref:    VMEM (1, 128)      Linear bias, tiled once per token group
    # o_ref:    VMEM (TM, 128)     packed output rows
    x = x_ref[...].astype(jnp.float32)

    # Segmented sum-of-squares per 32-lane token group (broadcast across the
    # group's lanes), already scaled by 1/D:   ss = ||x_tok||^2 / D
    ss = jnp.dot(x * x, mask_ref[...], preferred_element_type=jnp.float32)

    # x / clamp(sqrt(sum x^2)*D**-0.5, eps)  ==  x * rsqrt(max(ss, eps^2))
    y = x * jax.lax.rsqrt(jnp.maximum(ss, EPS * EPS))

    # fn = Linear(dim, dim), applied per token via the block-diagonal weight
    # (already transposed to (in, out) layout and scaled by g in the wrapper).
    out = jnp.dot(y, w_ref[...], preferred_element_type=jnp.float32) + b_ref[...]
    o_ref[...] = out.astype(o_ref.dtype)


def prenorm(x, g, w, b, tm_rows=1024):
    """x: (B, N, D), g: (1,), w: (D, D) [out, in], b: (D,) -> (B, N, D)."""
    B, N, D = x.shape
    assert LANES % D == 0, "feature dim must divide 128 for lane packing"
    pack = LANES // D
    M = B * N

    # ---- pack `pack` tokens per 128-lane row, pad rows to the tile size ----
    P = _round_up(M, pack) // pack                       # packed rows needed
    TM = max(8, min(_round_up(tm_rows, 8), _round_up(P, 8)))
    P_pad = _round_up(P, TM)
    M_pad = P_pad * pack

    x2 = x.reshape(M, D)
    if M_pad != M:
        x2 = jnp.pad(x2, ((0, M_pad - M), (0, 0)))       # zero rows: safe (clamped)
    xp = x2.reshape(P_pad, LANES)                        # lane-dense packed input

    # ---- constant operands, built once outside the kernel ----
    eye = jnp.eye(pack, dtype=jnp.float32)
    # block-diag weight in (in, out) layout, RMSNorm gain folded in
    w_big = jnp.kron(eye, w.astype(jnp.float32).T) * g.astype(jnp.float32)[0]
    mask = jnp.kron(eye, jnp.ones((D, D), jnp.float32)) * (1.0 / D)
    b_big = jnp.tile(b.astype(jnp.float32), pack).reshape(1, LANES)

    out = pl.pallas_call(
        prenorm_kernel,
        out_shape=jax.ShapeDtypeStruct((P_pad, LANES), x.dtype),
        grid_spec=pltpu.PrefetchScalarGridSpec(
            num_scalar_prefetch=0,
            grid=(P_pad // TM,),
            in_specs=[
                pl.BlockSpec((TM, LANES), lambda i: (i, 0)),         # x tile
                pl.BlockSpec((LANES, LANES), lambda i: (0, 0)),      # seg mask
                pl.BlockSpec((LANES, LANES), lambda i: (0, 0)),      # weight
                pl.BlockSpec((1, LANES), lambda i: (0, 0)),          # bias
            ],
            out_specs=pl.BlockSpec((TM, LANES), lambda i: (i, 0)),
        ),
        compiler_params=pltpu.CompilerParams(
            dimension_semantics=("parallel",)),
    )(xp, mask, w_big, b_big)

    return out.reshape(M_pad, D)[:M].reshape(B, N, D)


def prenorm_ref(x, g, w, b):
    # pure-JAX reference of the same semantics (norm over the true D axis)
    xf = x.astype(jnp.float32)
    scale = x.shape[-1] ** (-0.5)
    norm = jnp.sqrt(jnp.sum(xf * xf, axis=-1, keepdims=True)) * scale
    norm = jnp.maximum(norm, EPS)
    y = xf / norm * g[0]
    return (y @ w.astype(jnp.float32).T + b.astype(jnp.float32)).astype(x.dtype)


if __name__ == "__main__":
    key = jax.random.PRNGKey(0)
    kx, kw, kb = jax.random.split(key, 3)

    B, N = 2, 8
    x = jax.random.normal(kx, (B, N, DIM), dtype=jnp.float32)

    # Deterministic parameter init (synthetic):
    g = jnp.ones((1,), dtype=jnp.float32)                              # RMSNorm.g
    w = jax.random.normal(kw, (DIM, DIM), dtype=jnp.float32) * 0.02    # Linear.weight
    b = jax.random.normal(kb, (DIM,), dtype=jnp.float32) * 0.01        # Linear.bias

    out = prenorm(x, g, w, b)
    out = jax.block_until_ready(out)

    ref = prenorm_ref(x, g, w, b)
    assert out.shape == (B, N, DIM)
    assert jnp.allclose(out, ref, atol=1e-4, rtol=1e-4), \
        float(jnp.max(jnp.abs(out - ref)))

    print("KERNEL_OK")
</pallas_src>

<mosaic_0001>
module attributes {stable_mosaic.version = 11 : i64} {
  func.func @prenorm_kernel(%arg0: i32, %arg1: memref<8x128xf32, #tpu.memory_space<vmem>>, %arg2: memref<128x128xf32, #tpu.memory_space<vmem>>, %arg3: memref<128x128xf32, #tpu.memory_space<vmem>>, %arg4: memref<1x128xf32, #tpu.memory_space<vmem>>, %arg5: memref<8x128xf32, #tpu.memory_space<vmem>>) attributes {dimension_semantics = [#tpu.dimension_semantics<parallel>], iteration_bounds = array<i64: 1>, scalar_prefetch = 0 : i64, scratch_operands = 0 : i64, tpu.core_type = #tpu.core_type<tc>, window_params = [{transform_indices = @transform_0, window_bounds = array<i64: 8, 128>}, {pipeline_mode = #tpu.pipeline_mode<synchronous>, transform_indices = @transform_1, window_bounds = array<i64: 128, 128>}, {pipeline_mode = #tpu.pipeline_mode<synchronous>, transform_indices = @transform_2, window_bounds = array<i64: 128, 128>}, {pipeline_mode = #tpu.pipeline_mode<synchronous>, transform_indices = @transform_3, window_bounds = array<i64: 1, 128>}, {transform_indices = @transform_4, window_bounds = array<i64: 8, 128>}]} {
    %c0 = arith.constant 0 : index
    %c0_0 = arith.constant 0 : index
    %0 = vector.load %arg1[%c0, %c0_0] : memref<8x128xf32, #tpu.memory_space<vmem>>, vector<8x128xf32>
    %1 = arith.mulf %0, %0 : vector<8x128xf32>
    %c0_1 = arith.constant 0 : index
    %c0_2 = arith.constant 0 : index
    %2 = vector.load %arg2[%c0_1, %c0_2] : memref<128x128xf32, #tpu.memory_space<vmem>>, vector<128x128xf32>
    %cst = arith.constant dense<0.000000e+00> : vector<8x128xf32>
    %3 = tpu.matmul %1, %2, %cst {dimension_numbers = #tpu.dot_dimension_numbers<[1], [0], [0], [1], [0, 0, 1, 1], [], []>} : vector<8x128xf32>, vector<128x128xf32>, vector<8x128xf32> -> vector<8x128xf32>
    %cst_3 = arith.constant 1.000000e-16 : f32
    %4 = vector.broadcast %cst_3 : f32 to vector<8x128xf32>
    %5 = arith.maximumf %3, %4 : vector<8x128xf32>
    %6 = math.rsqrt %5 : vector<8x128xf32>
    %7 = arith.mulf %0, %6 : vector<8x128xf32>
    %c0_4 = arith.constant 0 : index
    %c0_5 = arith.constant 0 : index
    %8 = vector.load %arg3[%c0_4, %c0_5] : memref<128x128xf32, #tpu.memory_space<vmem>>, vector<128x128xf32>
    %cst_6 = arith.constant dense<0.000000e+00> : vector<8x128xf32>
    %9 = tpu.matmul %7, %8, %cst_6 {dimension_numbers = #tpu.dot_dimension_numbers<[1], [0], [0], [1], [0, 0, 1, 1], [], []>} : vector<8x128xf32>, vector<128x128xf32>, vector<8x128xf32> -> vector<8x128xf32>
    %c0_7 = arith.constant 0 : index
    %c0_8 = arith.constant 0 : index
    %10 = vector.load %arg4[%c0_7, %c0_8] : memref<1x128xf32, #tpu.memory_space<vmem>>, vector<1x128xf32>
    %11 = vector.broadcast %10 : vector<1x128xf32> to vector<8x128xf32>
    %12 = arith.addf %9, %11 : vector<8x128xf32>
    %c0_9 = arith.constant 0 : index
    %c0_10 = arith.constant 0 : index
    %13 = vector.load %arg5[%c0_9, %c0_10] : memref<8x128xf32, #tpu.memory_space<vmem>>, vector<8x128xf32>
    tpu.vector_store %arg5[%c0_9, %c0_10], %12 {strides = array<i32>} : memref<8x128xf32, #tpu.memory_space<vmem>>, vector<8x128xf32>,
    return
  }
  func.func @transform_0(%arg0: i32) -> (i32, i32) {
    %c0_i32 = arith.constant 0 : i32
    %c0_i32_0 = arith.constant 0 : i32
    return %arg0, %c0_i32 : i32, i32
  }
  func.func @transform_1(%arg0: i32) -> (i32, i32) {
    %c0_i32 = arith.constant 0 : i32
    %c0_i32_0 = arith.constant 0 : i32
    %c0_i32_1 = arith.constant 0 : i32
    return %c0_i32, %c0_i32_0 : i32, i32
  }
  func.func @transform_2(%arg0: i32) -> (i32, i32) {
    %c0_i32 = arith.constant 0 : i32
    %c0_i32_0 = arith.constant 0 : i32
    %c0_i32_1 = arith.constant 0 : i32
    return %c0_i32, %c0_i32_0 : i32, i32
  }
  func.func @transform_3(%arg0: i32) -> (i32, i32) {
    %c0_i32 = arith.constant 0 : i32
    %c0_i32_0 = arith.constant 0 : i32
    %c0_i32_1 = arith.constant 0 : i32
    return %c0_i32, %c0_i32_0 : i32, i32
  }
  func.func @transform_4(%arg0: i32) -> (i32, i32) {
    %c0_i32 = arith.constant 0 : i32
    %c0_i32_0 = arith.constant 0 : i32
    return %arg0, %c0_i32 : i32, i32
  }
}

</mosaic_0001>

<llo_original>
// kernel: tpu_custom_call.1
$region0: #{tpu_custom_call.1}
  #allocation0 [shape = 'u32[]', space=smem, size = 0x4, offset = 0x4, fixed_abs, tag = 'smem constant byte address 0x4 - core index']
  #allocation1 [shape = 'u32[144,128]{1,0:T(1,128)}', space=vmem, size = 0x12000, scoped, tag = 'internal scratch']
  %s0 = inlined_call_operand.hbm [shape: f32[8,128], index: 0, kind: input, shape index: {}]
  %s1 = inlined_call_operand.hbm [shape: f32[128,128], index: 1, kind: input, shape index: {}]
  %s2 = inlined_call_operand.hbm [shape: f32[128,128], index: 2, kind: input, shape index: {}]
  %s3 = inlined_call_operand.vmem [shape: f32[1,128], index: 3, kind: input, shape index: {}]
  %s4 = inlined_call_operand.hbm [shape: f32[8,128], index: 4, kind: output, shape index: {}]
  %s5 = sld [smem:[#allocation0]]
  $region38: #{tpu_custom_call.1} parent=0
    _
  %s7 = ssub.s32 1, %s5
  %s8 = scalar_select 0, %s7, %s5
  $region1: #{tpu_custom_call.1} parent=0
    #allocation2 [shape = 'u8[4096]{0}', space=vmem, size = 0x1000, scoped, tag = 'input window, operand 0, single buffered']
    #allocation3 [shape = 's32[1]{0}', space=sflag, size = 0x4, scoped, tag = 'scoped memory for tpu_custom_call.1']
    #allocation4 [shape = 's32[1]{0}', space=sflag, size = 0x4, scoped, tag = 'scoped memory for tpu_custom_call.1']
    #allocation5 [shape = 'u8[65536]{0}', space=vmem, size = 0x10000, scoped, tag = 'input window, operand 1, single buffered']
    #allocation6 [shape = 's32[1]{0}', space=sflag, size = 0x4, scoped, tag = 'scoped memory for tpu_custom_call.1']
    #allocation7 [shape = 'u8[65536]{0}', space=vmem, size = 0x10000, scoped, tag = 'input window, operand 2, single buffered']
    #allocation8 [shape = 'u8[4096]{0}', space=vmem, size = 0x1000, scoped, tag = 'output window, operand 0, single buffered']
    %9 = vsyncpa [#allocation3], 0
    %10 = vsyncpa [#allocation6], 0
    %11 = vsyncpa [#allocation4], 0
    // Predicated region
    $region2: #{tpu_custom_call.1} parent=1 // pred_check
      _
    $region3: #{tpu_custom_call.1} parent=1 // pred_check_branch
      %13 = sbr.rel (0) target = $region5
    $region4: #{tpu_custom_call.1} parent=1 // pred_region
      %s15 = ssub.s32 128, 128
      %16 = vsyncadd [#allocation3], %s15
      %s18 = sshll.u32 [#allocation2], 4
      %s19 = int_to_ptr.vmem [resolvable:$true] %s18
      %21 = dma.hbm_to_vmem [thread:$0]  %s0, 128, %s19, [#allocation3]
    $region5: #{tpu_custom_call.1} parent=1 // pred_fallthru
      _
    // Predicated region
    $region6: #{tpu_custom_call.1} parent=1 // pred_check
      _
    $region7: #{tpu_custom_call.1} parent=1 // pred_check_branch
      %23 = sbr.rel (0) target = $region9
    $region8: #{tpu_custom_call.1} parent=1 // pred_region
      %s25 = ssub.s32 2048, 2048
      %26 = vsyncadd [#allocation6], %s25
      %s27 = sshll.u32 [#allocation5], 4
      %s28 = int_to_ptr.vmem [resolvable:$true] %s27
      %33 = dma.hbm_to_vmem [thread:$0]  %s1, 2048, %s28, [#allocation6], 128, 128, 8
    $region9: #{tpu_custom_call.1} parent=1 // pred_fallthru
      _
    // Predicated region
    $region10: #{tpu_custom_call.1} parent=1 // pred_check
      _
    $region11: #{tpu_custom_call.1} parent=1 // pred_check_branch
      %35 = sbr.rel (0) target = $region13
    $region12: #{tpu_custom_call.1} parent=1 // pred_region
      %s37 = ssub.s32 2048, 2048
      %38 = vsyncadd [#allocation6], %s37
      %s39 = sshll.u32 [#allocation7], 4
      %s40 = int_to_ptr.vmem [resolvable:$true] %s39
      %45 = dma.hbm_to_vmem [thread:$0]  %s2, 2048, %s40, [#allocation6], 128, 128, 8
    $region13: #{tpu_custom_call.1} parent=1 // pred_fallthru
      _
    // Predicated region
    $region14: #{tpu_custom_call.1} parent=1 // pred_check
      _
    $region15: #{tpu_custom_call.1} parent=1 // pred_check_branch
      %47 = sbr.rel (0) target = $region17
    $region16: #{tpu_custom_call.1} parent=1 // pred_region
      _
    $region17: #{tpu_custom_call.1} parent=1 // pred_fallthru
      _
    // Predicated region
    $region18: #{tpu_custom_call.1} parent=1 // pred_check
      _
    $region19: #{tpu_custom_call.1} parent=1 // pred_check_branch
      %49 = sbr.rel (0) target = $region21
    $region20: #{tpu_custom_call.1} parent=1 // pred_region
      %50 = dma.done [#allocation3], 128
    $region21: #{tpu_custom_call.1} parent=1 // pred_fallthru
      _
    // Predicated region
    $region22: #{tpu_custom_call.1} parent=1 // pred_check
      _
    $region23: #{tpu_custom_call.1} parent=1 // pred_check_branch
      %52 = sbr.rel (0) target = $region25
    $region24: #{tpu_custom_call.1} parent=1 // pred_region
      %53 = dma.done [#allocation6], 2048
    $region25: #{tpu_custom_call.1} parent=1 // pred_fallthru
      _
    // Predicated region
    $region26: #{tpu_custom_call.1} parent=1 // pred_check
      _
    $region27: #{tpu_custom_call.1} parent=1 // pred_check_branch
      %55 = sbr.rel (0) target = $region29
    $region28: #{tpu_custom_call.1} parent=1 // pred_region
      %56 = dma.done [#allocation6], 2048
    $region29: #{tpu_custom_call.1} parent=1 // pred_fallthru
      _
    %v57 = vld [vmem:[#allocation2] sm:$0xff]
    %v58 = vmul.f32 %v57, %v57
    %v59 = vld [vmem:[#allocation5] sm:$0xff]
    %v60 = vld [vmem:[#allocation5 + $0x8] sm:$0xff]
    %v61 = vld [vmem:[#allocation5 + $0x10] sm:$0xff]
    %v62 = vld [vmem:[#allocation5 + $0x18] sm:$0xff]
    %v63 = vld [vmem:[#allocation5 + $0x20] sm:$0xff]
    %v64 = vld [vmem:[#allocation5 + $0x28] sm:$0xff]
    %v65 = vld [vmem:[#allocation5 + $0x30] sm:$0xff]
    %v66 = vld [vmem:[#allocation5 + $0x38] sm:$0xff]
    %v67 = vld [vmem:[#allocation5 + $0x40] sm:$0xff]
    %v68 = vld [vmem:[#allocation5 + $0x48] sm:$0xff]
    %v69 = vld [vmem:[#allocation5 + $0x50] sm:$0xff]
    %v70 = vld [vmem:[#allocation5 + $0x58] sm:$0xff]
    %v71 = vld [vmem:[#allocation5 + $0x60] sm:$0xff]
    %v72 = vld [vmem:[#allocation5 + $0x68] sm:$0xff]
    %v73 = vld [vmem:[#allocation5 + $0x70] sm:$0xff]
    %v74 = vld [vmem:[#allocation5 + $0x78] sm:$0xff]
    %75 = vmatprep.subr.mxu0 0.0
    %76 = vmatpush1.msra.mxu0 %v74
    %77 = vmatprep.subr.mxu0 0.0
    %78 = vmatpush1.msra.mxu0 %v73
    %79 = vmatprep.subr.mxu0 0.0
    %80 = vmatpush1.msra.mxu0 %v72
    %81 = vmatprep.subr.mxu0 0.0
    %82 = vmatpush1.msra.mxu0 %v71
    %83 = vmatprep.subr.mxu0 0.0
    %84 = vmatpush1.msra.mxu0 %v70
    %85 = vmatprep.subr.mxu0 0.0
    %86 = vmatpush1.msra.mxu0 %v69
    %87 = vmatprep.subr.mxu0 0.0
    %88 = vmatpush1.msra.mxu0 %v68
    %89 = vmatprep.subr.mxu0 0.0
    %90 = vmatpush1.msra.mxu0 %v67
    %91 = vmatprep.subr.mxu0 0.0
    %92 = vmatpush1.msra.mxu0 %v66
    %93 = vmatprep.subr.mxu0 0.0
    %94 = vmatpush1.msra.mxu0 %v65
    %95 = vmatprep.subr.mxu0 0.0
    %96 = vmatpush1.msra.mxu0 %v64
    %97 = vmatprep.subr.mxu0 0.0
    %98 = vmatpush1.msra.mxu0 %v63
    %99 = vmatprep.subr.mxu0 0.0
    %100 = vmatpush1.msra.mxu0 %v62
    %101 = vmatprep.subr.mxu0 0.0
    %102 = vmatpush1.msra.mxu0 %v61
    %103 = vmatprep.subr.mxu0 0.0
    %104 = vmatpush1.msra.mxu0 %v60
    %105 = vmatprep.subr.mxu0 0.0
    %106 = vmatpush1.msra.mxu0 %v59
    %107 = vmatprep.subr.mxu0 0.0
    %108 = vmatpush2.msra.mxu0 0.0
    %109 = vmatprep.subr.mxu0 0.0
    %110 = vmatpush2.msra.mxu0 0.0
    %111 = vmatprep.subr.mxu0 0.0
    %112 = vmatpush2.msra.mxu0 0.0
    %113 = vmatprep.subr.mxu0 0.0
    %114 = vmatpush2.msra.mxu0 0.0
    %115 = vmatprep.subr.mxu0 0.0
    %116 = vmatpush2.msra.mxu0 0.0
    %117 = vmatprep.subr.mxu0 0.0
    %118 = vmatpush2.msra.mxu0 0.0
    %119 = vmatprep.subr.mxu0 0.0
    %120 = vmatpush2.msra.mxu0 0.0
    %121 = vmatprep.subr.mxu0 0.0
    %122 = vmatpush2.msra.mxu0 0.0
    %123 = vmatprep.subr.mxu0 0.0
    %124 = vmatpush2.msra.mxu0 0.0
    %125 = vmatprep.subr.mxu0 0.0
    %126 = vmatpush2.msra.mxu0 0.0
    %127 = vmatprep.subr.mxu0 0.0
    %128 = vmatpush2.msra.mxu0 0.0
    %129 = vmatprep.subr.mxu0 0.0
    %130 = vmatpush2.msra.mxu0 0.0
    %131 = vmatprep.subr.mxu0 0.0
    %132 = vmatpush2.msra.mxu0 0.0
    %133 = vmatprep.subr.mxu0 0.0
    %134 = vmatpush2.msra.mxu0 0.0
    %135 = vmatprep.subr.mxu0 0.0
    %136 = vmatpush2.msra.mxu0 0.0
    %137 = vmatprep.subr.mxu0 0.0
    %138 = vmatpush2.msra.mxu0 0.0
    %139 = vmatprep.mubr.f32.mxu0 0.0
    %140 = vmatmul.mubr.f32.gmra.mxu0 %v58
    %v141 = vpop.f32.mrf.mxu0
    %v142 = vadd.f32 0.0, %v141
    %v143 = vpop.f32.mrf.mxu0
    %144 = vdwg.mxu0
    %v145 = vmax.f32 %v142, 1e-16
    %v146 = vrsqrt.pop %v145
    %v147 = vmul.f32 %v57, %v146
    %v148 = vld [vmem:[#allocation7] sm:$0xff]
    %v149 = vld [vmem:[#allocation7 + $0x8] sm:$0xff]
    %v150 = vld [vmem:[#allocation7 + $0x10] sm:$0xff]
    %v151 = vld [vmem:[#allocation7 + $0x18] sm:$0xff]
    %v152 = vld [vmem:[#allocation7 + $0x20] sm:$0xff]
    %v153 = vld [vmem:[#allocation7 + $0x28] sm:$0xff]
    %v154 = vld [vmem:[#allocation7 + $0x30] sm:$0xff]
    %v155 = vld [vmem:[#allocation7 + $0x38] sm:$0xff]
    %v156 = vld [vmem:[#allocation7 + $0x40] sm:$0xff]
    %v157 = vld [vmem:[#allocation7 + $0x48] sm:$0xff]
    %v158 = vld [vmem:[#allocation7 + $0x50] sm:$0xff]
    %v159 = vld [vmem:[#allocation7 + $0x58] sm:$0xff]
    %v160 = vld [vmem:[#allocation7 + $0x60] sm:$0xff]
    %v161 = vld [vmem:[#allocation7 + $0x68] sm:$0xff]
    %v162 = vld [vmem:[#allocation7 + $0x70] sm:$0xff]
    %v163 = vld [vmem:[#allocation7 + $0x78] sm:$0xff]
    %v164 = vld [vmem:[%s3] sm:$0x1]
    %v166 = vlaneseq
    %v167 = vshrl.u32 %v166, 7
    %v168 = vsub.s32 0, %v167
    %v169 = vrot.slane %v164, %v168
    %171 = vmatprep.subr.mxu0 0.0
    %172 = vmatpush1.msra.mxu0 %v163
    %173 = vmatprep.subr.mxu0 0.0
    %174 = vmatpush1.msra.mxu0 %v162
    %175 = vmatprep.subr.mxu0 0.0
    %176 = vmatpush1.msra.mxu0 %v161
    %177 = vmatprep.subr.mxu0 0.0
    %178 = vmatpush1.msra.mxu0 %v160
    %179 = vmatprep.subr.mxu0 0.0
    %180 = vmatpush1.msra.mxu0 %v159
    %181 = vmatprep.subr.mxu0 0.0
    %182 = vmatpush1.msra.mxu0 %v158
    %183 = vmatprep.subr.mxu0 0.0
    %184 = vmatpush1.msra.mxu0 %v157
    %185 = vmatprep.subr.mxu0 0.0
    %186 = vmatpush1.msra.mxu0 %v156
    %187 = vmatprep.subr.mxu0 0.0
    %188 = vmatpush1.msra.mxu0 %v155
    %189 = vmatprep.subr.mxu0 0.0
    %190 = vmatpush1.msra.mxu0 %v154
    %191 = vmatprep.subr.mxu0 0.0
    %192 = vmatpush1.msra.mxu0 %v153
    %193 = vmatprep.subr.mxu0 0.0
    %194 = vmatpush1.msra.mxu0 %v152
    %195 = vmatprep.subr.mxu0 0.0
    %196 = vmatpush1.msra.mxu0 %v151
    %197 = vmatprep.subr.mxu0 0.0
    %198 = vmatpush1.msra.mxu0 %v150
    %199 = vmatprep.subr.mxu0 0.0
    %200 = vmatpush1.msra.mxu0 %v149
    %201 = vmatprep.subr.mxu0 0.0
    %202 = vmatpush1.msra.mxu0 %v148
    %203 = vmatprep.subr.mxu0 0.0
    %204 = vmatpush2.msra.mxu0 0.0
    %205 = vmatprep.subr.mxu0 0.0
    %206 = vmatpush2.msra.mxu0 0.0
    %207 = vmatprep.subr.mxu0 0.0
    %208 = vmatpush2.msra.mxu0 0.0
    %209 = vmatprep.subr.mxu0 0.0
    %210 = vmatpush2.msra.mxu0 0.0
    %211 = vmatprep.subr.mxu0 0.0
    %212 = vmatpush2.msra.mxu0 0.0
    %213 = vmatprep.subr.mxu0 0.0
    %214 = vmatpush2.msra.mxu0 0.0
    %215 = vmatprep.subr.mxu0 0.0
    %216 = vmatpush2.msra.mxu0 0.0
    %217 = vmatprep.subr.mxu0 0.0
    %218 = vmatpush2.msra.mxu0 0.0
    %219 = vmatprep.subr.mxu0 0.0
    %220 = vmatpush2.msra.mxu0 0.0
    %221 = vmatprep.subr.mxu0 0.0
    %222 = vmatpush2.msra.mxu0 0.0
    %223 = vmatprep.subr.mxu0 0.0
    %224 = vmatpush2.msra.mxu0 0.0
    %225 = vmatprep.subr.mxu0 0.0
    %226 = vmatpush2.msra.mxu0 0.0
    %227 = vmatprep.subr.mxu0 0.0
    %228 = vmatpush2.msra.mxu0 0.0
    %229 = vmatprep.subr.mxu0 0.0
    %230 = vmatpush2.msra.mxu0 0.0
    %231 = vmatprep.subr.mxu0 0.0
    %232 = vmatpush2.msra.mxu0 0.0
    %233 = vmatprep.subr.mxu0 0.0
    %234 = vmatpush2.msra.mxu0 0.0
    %235 = vmatprep.mubr.f32.mxu0 0.0
    %236 = vmatmul.mubr.f32.gmra.mxu0 %v147
    %v237 = vpop.f32.mrf.mxu0
    %v238 = vadd.f32 %v169, %v237
    %v239 = vpop.f32.mrf.mxu0
    %240 = vdwg.mxu0
    %241 = vst [vmem:[#allocation8] sm:$0xff] %v238
    // Predicated region
    $region30: #{tpu_custom_call.1} parent=1 // pred_check
      _
    $region31: #{tpu_custom_call.1} parent=1 // pred_check_branch
      %243 = sbr.rel (0) target = $region33
    $region32: #{tpu_custom_call.1} parent=1 // pred_region
      %s245 = ssub.s32 128, 128
      %246 = vsyncadd [#allocation4], %s245
      %s248 = sshll.u32 [#allocation8], 4
      %s249 = int_to_ptr.vmem [resolvable:$true] %s248
      %251 = dma.vmem_to_hbm [thread:$0]  %s249, 128, %s4, [#allocation4]
    $region33: #{tpu_custom_call.1} parent=1 // pred_fallthru
      _
    // Predicated region
    $region34: #{tpu_custom_call.1} parent=1 // pred_check
      _
    $region35: #{tpu_custom_call.1} parent=1 // pred_check_branch
      %253 = sbr.rel (0) target = $region37
    $region36: #{tpu_custom_call.1} parent=1 // pred_region
      %254 = dma.done [#allocation4], 128
    $region37: #{tpu_custom_call.1} parent=1 // pred_fallthru
      _
    %255 = vsyncpa [#allocation3], 1
    %256 = vsyncpa [#allocation6], 1
    %257 = vsyncpa [#allocation4], 1

</llo_original>
